<compile_context>
chip_gen: v7x
topology: tpu7x:2x2x1
jax: 0.10.0
libtpu: 0.0.40
codegen_flags: <defaults>
</compile_context>

<pallas_src>
import functools

import jax
import jax.numpy as jnp
from jax.experimental import pallas as pl
from jax.experimental.pallas import tpu as pltpu

VMEM_LIMIT = 32 * 1024 * 1024    # scoped-VMEM ceiling that is safe on v5e/v6e/v7x
VMEM_BUDGET = 20 * 1024 * 1024   # conservative double-buffered working-set budget


def _round_up(x, m):
    return -(-x // m) * m


def _pick_tile(ksub, cout, m, out_bytes, budget=VMEM_BUDGET):
    """Largest lane tile whose double-buffered working set (both kernels) fits the budget."""
    m128 = _round_up(m, 128)
    for tm in (16384, 8192, 4096, 2048, 1024, 512, 256, 128):
        if tm > m128:
            continue
        k1 = 2 * (ksub * tm * 2 + cout * tm * 2 + cout * ksub * 2)   # matmul+stats (bf16)
        k2 = 2 * (cout * tm * 2 + cout * tm * out_bytes)             # BN+ReLU epilogue
        if max(k1, k2) <= budget:
            return tm
    return 128


def _matmul_stats_kernel(w_ref, p_ref, y_ref, sum_ref, sq_ref):
    """Per phase: y = W_sub(Cout,Ksub) @ patches(Ksub,TM) on the MXU + f32 channel stats."""
    m = pl.program_id(1)

    @pl.when(m == 0)
    def _():
        sum_ref[...] = jnp.zeros_like(sum_ref)
        sq_ref[...] = jnp.zeros_like(sq_ref)

    y = jnp.dot(w_ref[0], p_ref[0], preferred_element_type=jnp.float32)   # (Cout, TM) f32
    sum_ref[...] += jnp.sum(y, axis=1, keepdims=True)[None]
    sq_ref[...] += jnp.sum(y * y, axis=1, keepdims=True)[None]
    y_ref[...] = y[None].astype(y_ref.dtype)


def _bn_relu_kernel(m_real, eps, y_ref, sum_ref, sq_ref, g_ref, b_ref, o_ref):
    """Fused stats-finalize + BatchNorm affine + ReLU on one lane-dense (Cout, TM) tile."""
    inv_m = 1.0 / m_real
    ch_sum = jnp.sum(sum_ref[...], axis=0)                       # (Cout, 1) f32
    ch_sq = jnp.sum(sq_ref[...], axis=0)
    mean = ch_sum * inv_m
    var = jnp.maximum(ch_sq * inv_m - mean * mean, 0.0)          # biased train-mode var
    scale = g_ref[...] * jax.lax.rsqrt(var + eps)
    shift = b_ref[...] - mean * scale
    y = y_ref[0].astype(jnp.float32)
    o_ref[...] = jnp.maximum(y * scale + shift, 0.0)[None].astype(o_ref.dtype)


def deconv_block_forward(x, weight, gamma, beta, *, stride, padding, eps=1e-5,
                         out_dtype=jnp.bfloat16):
    """x: (N, Cin, H, W); weight: (Cin, Cout, kH, kW) (PyTorch ConvTranspose2d layout)."""
    N, Cin, H, W = x.shape
    cin_w, Cout, kH, kW = weight.shape
    assert Cin == cin_w and kH == kW
    k, s, p = kH, stride, padding
    assert p <= k - 1, "only padding <= kernel_size - 1 supported"
    assert k % s == 0 and (k - 2 * p) % s == 0, "unsupported deconv geometry (see TODO)"

    H_out = (H - 1) * s - 2 * p + k
    W_out = (W - 1) * s - 2 * p + k
    Hq, Wq = H_out // s, W_out // s          # per-phase output grid
    Q = k // s                               # taps per spatial dim per phase
    P = s * s                                # number of sub-pixel phases
    Ksub = Cin * Q * Q
    Mq = N * Hq * Wq                         # output pixels per phase
    M_real = N * H_out * W_out               # BN population size

    # --- sub-pixel phase geometry (same along H and W) ---
    a = [(r + p) // s for r in range(s)]               # input-row offset per phase
    c = [(r + p) % s for r in range(s)]                # first contributing tap per phase
    shift_r = [a[r] - Q + 1 for r in range(s)]
    pad_lo = max(0, -min(shift_r))
    pad_hi_h = max(0, (Hq - 1) + max(a) - (H - 1))
    pad_hi_w = max(0, (Wq - 1) + max(a) - (W - 1))
    base = [shift_r[r] + pad_lo for r in range(s)]     # top-left slice offset per phase

    # --- XLA glue (single materialization): sub-pixel im2col over the ORIGINAL x ---
    # No stride-dilation zeros: s^2 x fewer HBM bytes than a zero-dilated im2col, and the
    # reshape after the stack is a pure view (contiguous regrouping), so only ONE
    # inflated tensor is ever written.
    x_t = jnp.transpose(x.astype(jnp.bfloat16), (1, 0, 2, 3))            # (Cin, N, H, W)
    x_p = jnp.pad(x_t, ((0, 0), (0, 0), (pad_lo, pad_hi_h), (pad_lo, pad_hi_w)))
    slices = []
    for rh in range(s):
        for rw in range(s):
            for dq in range(Q):
                for dr in range(Q):
                    h0 = base[rh] + dq
                    w0 = base[rw] + dr
                    slices.append(x_p[:, :, h0:h0 + Hq, w0:w0 + Wq])     # (Cin, N, Hq, Wq)
    patT = jnp.stack(slices, axis=0).reshape(P, Q * Q * Cin, Mq)         # (P, Ksub, Mq)

    # per-phase flipped sub-kernels, K ordered (dq, dr, ci) to match patT
    w_list = []
    for rh in range(s):
        for rw in range(s):
            sub = weight[:, :, c[rh]::s, c[rw]::s][:, :, ::-1, ::-1]     # (Cin, Cout, Q, Q)
            w_list.append(jnp.transpose(sub, (1, 2, 3, 0)).reshape(Cout, Q * Q * Cin))
    w_sub = jnp.stack(w_list, axis=0).astype(jnp.bfloat16)               # (P, Cout, Ksub)

    out_bytes = jnp.dtype(out_dtype).itemsize
    TM = _pick_tile(Ksub, Cout, Mq, out_bytes)
    Mp = _round_up(Mq, TM)
    if Mp != Mq:
        patT = jnp.pad(patT, ((0, 0), (0, 0), (0, Mp - Mq)))   # zero cols -> 0 in stats
    n_m = Mp // TM

    # --- kernel 1: per-phase matmul on the MXU + f32 channel sum / sum-of-squares ---
    y, psum, psq = pl.pallas_call(
        _matmul_stats_kernel,
        out_shape=(
            jax.ShapeDtypeStruct((P, Cout, Mp), jnp.bfloat16),
            jax.ShapeDtypeStruct((P, Cout, 1), jnp.float32),
            jax.ShapeDtypeStruct((P, Cout, 1), jnp.float32),
        ),
        grid_spec=pltpu.PrefetchScalarGridSpec(
            num_scalar_prefetch=0,
            grid=(P, n_m),
            in_specs=[
                pl.BlockSpec((1, Cout, Ksub), lambda ph, m: (ph, 0, 0)),
                pl.BlockSpec((1, Ksub, TM), lambda ph, m: (ph, 0, m)),
            ],
            out_specs=[
                pl.BlockSpec((1, Cout, TM), lambda ph, m: (ph, 0, m)),
                pl.BlockSpec((1, Cout, 1), lambda ph, m: (ph, 0, 0)),
                pl.BlockSpec((1, Cout, 1), lambda ph, m: (ph, 0, 0)),
            ],
        ),
        compiler_params=pltpu.CompilerParams(
            dimension_semantics=("arbitrary", "arbitrary"),
            vmem_limit_bytes=VMEM_LIMIT),
    )(w_sub, patT)

    # --- kernel 2: fused stats-finalize + BN affine + ReLU, bf16 (or out_dtype) output ---
    g2 = gamma.astype(jnp.float32).reshape(Cout, 1)
    b2 = beta.astype(jnp.float32).reshape(Cout, 1)
    o_ph = pl.pallas_call(
        functools.partial(_bn_relu_kernel, float(M_real), float(eps)),
        out_shape=jax.ShapeDtypeStruct((P, Cout, Mp), out_dtype),
        grid_spec=pltpu.PrefetchScalarGridSpec(
            num_scalar_prefetch=0,
            grid=(P, n_m),
            in_specs=[
                pl.BlockSpec((1, Cout, TM), lambda ph, m: (ph, 0, m)),
                pl.BlockSpec((P, Cout, 1), lambda ph, m: (0, 0, 0)),
                pl.BlockSpec((P, Cout, 1), lambda ph, m: (0, 0, 0)),
                pl.BlockSpec((Cout, 1), lambda ph, m: (0, 0)),
                pl.BlockSpec((Cout, 1), lambda ph, m: (0, 0)),
            ],
            out_specs=pl.BlockSpec((1, Cout, TM), lambda ph, m: (ph, 0, m)),
        ),
        compiler_params=pltpu.CompilerParams(
            dimension_semantics=("parallel", "parallel"),
            vmem_limit_bytes=VMEM_LIMIT),
    )(y, psum, psq, g2, b2)

    # s x s pixel-shuffle of the (phase, Cout, n, h', w') result into NCHW (one bf16 pass).
    o = o_ph[:, :, :Mq].reshape(s, s, Cout, N, Hq, Wq)
    o = jnp.transpose(o, (3, 2, 4, 0, 5, 1)).reshape(N, Cout, H_out, W_out)
    return o


if __name__ == "__main__":
    key = jax.random.PRNGKey(0)
    kx, kw = jax.random.split(key)

    # DeconvBlock(in_channels=4, out_channels=8, kernel_size=4, stride=2, padding=1)
    N, Cin, H, W = 2, 4, 16, 16
    Cout, ksize, stride, padding = 8, 4, 2, 1

    x = jax.random.normal(kx, (N, Cin, H, W), jnp.float32)
    # ConvTranspose2d weight shape: (Cin, Cout, kH, kW)
    weight = 0.1 * jax.random.normal(kw, (Cin, Cout, ksize, ksize), jnp.float32)
    # BatchNorm2d affine params at their PyTorch init values
    gamma = jnp.ones((Cout,), jnp.float32)
    beta = jnp.zeros((Cout,), jnp.float32)

    out = deconv_block_forward(x, weight, gamma, beta, stride=stride, padding=padding)
    out = jax.block_until_ready(out)

    H_out = (H - 1) * stride - 2 * padding + ksize
    W_out = (W - 1) * stride - 2 * padding + ksize
    assert out.shape == (N, Cout, H_out, W_out), out.shape
    out_f = out.astype(jnp.float32)
    assert bool(jnp.all(jnp.isfinite(out_f))) and bool(jnp.all(out_f >= 0.0))

    # f32 XLA reference: conv-transpose (lhs-dilated conv, flipped kernel) + train BN + ReLU
    rhs = jnp.transpose(weight, (1, 0, 2, 3))[:, :, ::-1, ::-1]
    conv = jax.lax.conv_general_dilated(
        x, rhs, window_strides=(1, 1),
        padding=[(ksize - 1 - padding, ksize - 1 - padding)] * 2,
        lhs_dilation=(stride, stride),
        dimension_numbers=("NCHW", "OIHW", "NCHW"))
    mu = conv.mean(axis=(0, 2, 3), keepdims=True)
    va = conv.var(axis=(0, 2, 3), keepdims=True)
    ref = jnp.maximum((conv - mu) * jax.lax.rsqrt(va + 1e-5) * gamma.reshape(1, -1, 1, 1)
                      + beta.reshape(1, -1, 1, 1), 0.0)
    max_err = float(jnp.max(jnp.abs(out_f - ref)))
    assert max_err < 0.2, f"max abs err vs f32 reference = {max_err}"
    print("KERNEL_OK")
</pallas_src>

<mosaic_0001>
module attributes {stable_mosaic.version = 11 : i64} {
  func.func @_matmul_stats_kernel(%arg0: i32, %arg1: i32, %arg2: memref<1x8x16xbf16, #tpu.memory_space<vmem>>, %arg3: memref<1x16x512xbf16, #tpu.memory_space<vmem>>, %arg4: memref<1x8x512xbf16, #tpu.memory_space<vmem>>, %arg5: memref<1x8x1xf32, #tpu.memory_space<vmem>>, %arg6: memref<1x8x1xf32, #tpu.memory_space<vmem>>) attributes {dimension_semantics = [#tpu.dimension_semantics<arbitrary>, #tpu.dimension_semantics<arbitrary>], iteration_bounds = array<i64: 4, 1>, scalar_prefetch = 0 : i64, scratch_operands = 0 : i64, tpu.core_type = #tpu.core_type<tc>, window_params = [{transform_indices = @transform_0, window_bounds = array<i64: 1, 8, 16>}, {transform_indices = @transform_1, window_bounds = array<i64: 1, 16, 512>}, {transform_indices = @transform_2, window_bounds = array<i64: 1, 8, 512>}, {transform_indices = @transform_3, window_bounds = array<i64: 1, 8, 1>}, {transform_indices = @transform_4, window_bounds = array<i64: 1, 8, 1>}]} {
    %c0_i32 = arith.constant 0 : i32
    %0 = arith.cmpi eq, %arg1, %c0_i32 : i32
    %1 = arith.extui %0 : i1 to i32
    %c0_i32_0 = arith.constant 0 : i32
    %2 = arith.cmpi ne, %1, %c0_i32_0 : i32
    scf.if %2 {
      %cst_23 = arith.constant 0.000000e+00 : f32
      %24 = vector.broadcast %cst_23 : f32 to vector<1x8x1xf32>
      %c0_24 = arith.constant 0 : index
      %c0_25 = arith.constant 0 : index
      %c0_26 = arith.constant 0 : index
      %25 = vector.load %arg5[%c0_24, %c0_25, %c0_26] : memref<1x8x1xf32, #tpu.memory_space<vmem>>, vector<1x8x1xf32>
      tpu.vector_store %arg5[%c0_24, %c0_25, %c0_26], %24 {strides = array<i32>} : memref<1x8x1xf32, #tpu.memory_space<vmem>>, vector<1x8x1xf32>,
      %cst_27 = arith.constant 0.000000e+00 : f32
      %26 = vector.broadcast %cst_27 : f32 to vector<1x8x1xf32>
      %c0_28 = arith.constant 0 : index
      %c0_29 = arith.constant 0 : index
      %c0_30 = arith.constant 0 : index
      %27 = vector.load %arg6[%c0_28, %c0_29, %c0_30] : memref<1x8x1xf32, #tpu.memory_space<vmem>>, vector<1x8x1xf32>
      tpu.vector_store %arg6[%c0_28, %c0_29, %c0_30], %26 {strides = array<i32>} : memref<1x8x1xf32, #tpu.memory_space<vmem>>, vector<1x8x1xf32>,
    } else {
    }
    %c0 = arith.constant 0 : index
    %c0_1 = arith.constant 0 : index
    %c0_2 = arith.constant 0 : index
    %3 = vector.load %arg2[%c0, %c0_1, %c0_2] : memref<1x8x16xbf16, #tpu.memory_space<vmem>>, vector<1x8x16xbf16>
    %4 = vector.shape_cast %3 : vector<1x8x16xbf16> to vector<8x16xbf16>
    %c0_3 = arith.constant 0 : index
    %c0_4 = arith.constant 0 : index
    %c0_5 = arith.constant 0 : index
    %5 = vector.load %arg3[%c0_3, %c0_4, %c0_5] : memref<1x16x512xbf16, #tpu.memory_space<vmem>>, vector<1x16x512xbf16>
    %6 = vector.shape_cast %5 : vector<1x16x512xbf16> to vector<16x512xbf16>
    %cst = arith.constant dense<0.000000e+00> : vector<8x512xf32>
    %7 = tpu.matmul %4, %6, %cst {dimension_numbers = #tpu.dot_dimension_numbers<[1], [0], [0], [1], [0, 0, 1, 1], [], []>} : vector<8x16xbf16>, vector<16x512xbf16>, vector<8x512xf32> -> vector<8x512xf32>
    %c0_6 = arith.constant 0 : index
    %c0_7 = arith.constant 0 : index
    %c0_8 = arith.constant 0 : index
    %8 = vector.load %arg5[%c0_6, %c0_7, %c0_8] : memref<1x8x1xf32, #tpu.memory_space<vmem>>, vector<1x8x1xf32>
    %cst_9 = arith.constant dense<0.000000e+00> : vector<8xf32>
    %9 = vector.multi_reduction <add>, %7, %cst_9 [1] : vector<8x512xf32> to vector<8xf32>
    %10 = vector.shape_cast %9 : vector<8xf32> to vector<8x1xf32>
    %11 = vector.shape_cast %10 : vector<8x1xf32> to vector<1x8x1xf32>
    %12 = arith.addf %8, %11 : vector<1x8x1xf32>
    %c0_10 = arith.constant 0 : index
    %c0_11 = arith.constant 0 : index
    %c0_12 = arith.constant 0 : index
    %13 = vector.load %arg5[%c0_10, %c0_11, %c0_12] : memref<1x8x1xf32, #tpu.memory_space<vmem>>, vector<1x8x1xf32>
    tpu.vector_store %arg5[%c0_10, %c0_11, %c0_12], %12 {strides = array<i32>} : memref<1x8x1xf32, #tpu.memory_space<vmem>>, vector<1x8x1xf32>,
    %c0_13 = arith.constant 0 : index
    %c0_14 = arith.constant 0 : index
    %c0_15 = arith.constant 0 : index
    %14 = vector.load %arg6[%c0_13, %c0_14, %c0_15] : memref<1x8x1xf32, #tpu.memory_space<vmem>>, vector<1x8x1xf32>
    %15 = arith.mulf %7, %7 : vector<8x512xf32>
    %cst_16 = arith.constant dense<0.000000e+00> : vector<8xf32>
    %16 = vector.multi_reduction <add>, %15, %cst_16 [1] : vector<8x512xf32> to vector<8xf32>
    %17 = vector.shape_cast %16 : vector<8xf32> to vector<8x1xf32>
    %18 = vector.shape_cast %17 : vector<8x1xf32> to vector<1x8x1xf32>
    %19 = arith.addf %14, %18 : vector<1x8x1xf32>
    %c0_17 = arith.constant 0 : index
    %c0_18 = arith.constant 0 : index
    %c0_19 = arith.constant 0 : index
    %20 = vector.load %arg6[%c0_17, %c0_18, %c0_19] : memref<1x8x1xf32, #tpu.memory_space<vmem>>, vector<1x8x1xf32>
    tpu.vector_store %arg6[%c0_17, %c0_18, %c0_19], %19 {strides = array<i32>} : memref<1x8x1xf32, #tpu.memory_space<vmem>>, vector<1x8x1xf32>,
    %21 = vector.shape_cast %7 : vector<8x512xf32> to vector<1x8x512xf32>
    %22 = arith.truncf %21 : vector<1x8x512xf32> to vector<1x8x512xbf16>
    %c0_20 = arith.constant 0 : index
    %c0_21 = arith.constant 0 : index
    %c0_22 = arith.constant 0 : index
    %23 = vector.load %arg4[%c0_20, %c0_21, %c0_22] : memref<1x8x512xbf16, #tpu.memory_space<vmem>>, vector<1x8x512xbf16>
    tpu.vector_store %arg4[%c0_20, %c0_21, %c0_22], %22 {strides = array<i32>} : memref<1x8x512xbf16, #tpu.memory_space<vmem>>, vector<1x8x512xbf16>,
    return
  }
  func.func @transform_0(%arg0: i32, %arg1: i32) -> (i32, i32, i32) {
    %c0_i32 = arith.constant 0 : i32
    %c0_i32_0 = arith.constant 0 : i32
    %c0_i32_1 = arith.constant 0 : i32
    return %arg0, %c0_i32, %c0_i32_0 : i32, i32, i32
  }
  func.func @transform_1(%arg0: i32, %arg1: i32) -> (i32, i32, i32) {
    %c0_i32 = arith.constant 0 : i32
    %c0_i32_0 = arith.constant 0 : i32
    return %arg0, %c0_i32, %arg1 : i32, i32, i32
  }
  func.func @transform_2(%arg0: i32, %arg1: i32) -> (i32, i32, i32) {
    %c0_i32 = arith.constant 0 : i32
    %c0_i32_0 = arith.constant 0 : i32
    return %arg0, %c0_i32, %arg1 : i32, i32, i32
  }
  func.func @transform_3(%arg0: i32, %arg1: i32) -> (i32, i32, i32) {
    %c0_i32 = arith.constant 0 : i32
    %c0_i32_0 = arith.constant 0 : i32
    %c0_i32_1 = arith.constant 0 : i32
    return %arg0, %c0_i32, %c0_i32_0 : i32, i32, i32
  }
  func.func @transform_4(%arg0: i32, %arg1: i32) -> (i32, i32, i32) {
    %c0_i32 = arith.constant 0 : i32
    %c0_i32_0 = arith.constant 0 : i32
    %c0_i32_1 = arith.constant 0 : i32
    return %arg0, %c0_i32, %c0_i32_0 : i32, i32, i32
  }
}

</mosaic_0001>

<llo_original>
// kernel: tpu_custom_call.1
$region0: #{tpu_custom_call.1}
  #allocation0 [shape = 'u32[]', space=smem, size = 0x4, offset = 0x4, fixed_abs, tag = 'smem constant byte address 0x4 - core index']
  #allocation1 [shape = 'u32[144,128]{1,0:T(1,128)}', space=vmem, size = 0x12000, scoped, tag = 'internal scratch']
  %s0 = inlined_call_operand.hbm [shape: bf16[4,8,16], index: 0, kind: input, shape index: {}]
  %s1 = inlined_call_operand.hbm [shape: bf16[4,16,512], index: 1, kind: input, shape index: {}]
  %s2 = inlined_call_operand.hbm [shape: bf16[4,8,512], index: 2, kind: output, shape index: {0}]
  %s3 = inlined_call_operand.vmem [shape: f32[4,8,1], index: 3, kind: output, shape index: {1}]
  %s4 = inlined_call_operand.vmem [shape: f32[4,8,1], index: 4, kind: output, shape index: {2}]
  %5 = xla_tuple %s2, %s3, %s4
  %s6 = sld [smem:[#allocation0]]
  $region69: #{tpu_custom_call.1} parent=0
    _
  %s8 = ssub.s32 1, %s6
  %s9 = scalar_select 0, %s8, %s6
  $region1: #{tpu_custom_call.1} parent=0
    #allocation2 [shape = 'u8[4096]{0}', space=vmem, size = 0x1000, scoped, tag = 'input window, operand 0']
    #allocation3 [shape = 's32[2]{0}', space=sflag, size = 0x8, scoped, tag = 'scoped memory for tpu_custom_call.1']
    #allocation4 [shape = 's32[2]{0}', space=sflag, size = 0x8, scoped, tag = 'scoped memory for tpu_custom_call.1']
    #allocation5 [shape = 'u8[32768]{0}', space=vmem, size = 0x8000, scoped, tag = 'input window, operand 1']
    #allocation6 [shape = 's32[2]{0}', space=sflag, size = 0x8, scoped, tag = 'scoped memory for tpu_custom_call.1']
    #allocation7 [shape = 'u8[16384]{0}', space=vmem, size = 0x4000, scoped, tag = 'output window, operand 0']
    %10 = vsyncpa [#allocation3], 0
    %s11 = scalar_lea.sflag [#allocation3], 1
    %12 = vsyncpa %s11, 0
    %13 = vsyncpa [#allocation6], 0
    %s14 = scalar_lea.sflag [#allocation6], 1
    %15 = vsyncpa %s14, 0
    %16 = vsyncpa [#allocation4], 0
    %s17 = scalar_lea.sflag [#allocation4], 1
    %18 = vsyncpa %s17, 0
    loop: start=0, step=1, limit=6
    $region2: #{tpu_custom_call.1} parent=1 // loop_pre_header
      _
    $region3: #{tpu_custom_call.1} parent=1 // loop_header
      %s20 = sphi 0, %s24
      %p21 = scmp.ge.s32.totalorder %s20, 6
      %s27 = sphi 0, %s39
      %s28 = sphi 0, %s35
      %s29 = sphi 0, %s27
      %s30 = sphi 0, %s28
      %s31 = sphi 0, %s29
      %s32 = sphi 0, %s30
      %s42 = sphi 0, %s44
      %s45 = sphi 0, %s42
      %s46 = sphi 0, %s45
      %s62 = sphi 0, %s46
      %s70 = sphi 0, %s72
      %s73 = sphi 0, %s70
      %s74 = sphi 0, %s73
      %s90 = sphi 0, %s74
      %s98 = sphi 0, %s100
      %s101 = sphi 0, %s98
      %s102 = sphi 0, %s101
      %s118 = sphi 0, %s102
      %s124 = sphi 0, %s126
      %s127 = sphi 0, %s124
      %s128 = sphi 0, %s127
      %s144 = sphi 0, %s128
      %s150 = sphi 0, %s152
      %s153 = sphi 0, %s150
      %s154 = sphi 0, %s153
      %s170 = sphi 0, %s154
    $region4: #{tpu_custom_call.1} parent=1 // loop_header_branch
      %23 = sbr.rel (%p21) target = $region8
    $region5: #{tpu_custom_call.1} parent=1 // loop_body
      %s25 = ssub.s32 %s20, 1
      %s26 = ssub.s32 %s20, 2
      %s33 = sadd.s32 1, %s28
      %p34 = scmp.ge.s32.totalorder %s33, 1
      %s35 = scalar_select %p34, 0, %s33
      %s36 = sadd.s32 1, %s27
      %s37 = scalar_select %p34, %s36, %s27
      %p38 = scmp.ge.s32.totalorder %s37, 4
      %s39 = scalar_select %p38, 0, %s37
      %s40 = ssub.s32 %s27, %s39
      %p41 = scmp.eq.s32.totalorder %s40, 0
      %s43 = sadd.s32 %s42, 1
      %s44 = scalar_select %p41, %s42, %s43
      %p47 = pneg %p41
      %p48 = scmp.eq.s32.totalorder %s20, 3
      %p49 = por %p47, %p48
      %p50 = scmp.ne.s32.totalorder %s42, %s45
      %p51 = scmp.eq.s32.totalorder %s20, 0
      %p52 = por %p50, %p51
      %p53 = scmp.ne.s32.totalorder %s42, %s45
      %p54 = scmp.eq.s32.totalorder %s25, 3
      %p55 = por %p53, %p54
      %p56 = scmp.ne.s32.totalorder %s45, %s46
      %p57 = scmp.eq.s32.totalorder %s25, 0
      %p58 = por %p56, %p57
      %p59 = scmp.ne.s32.totalorder %s45, %s46
      %p60 = scmp.eq.s32.totalorder %s26, 3
      %p61 = por %p59, %p60
      %p63 = scmp.ne.s32.totalorder %s46, %s62
      %p64 = scmp.eq.s32.totalorder %s26, 0
      %p65 = por %p63, %p64
      %s66 = ssub.s32 %s27, %s39
      %s67 = ssub.s32 %s28, %s35
      %s68 = sor.u32 %s66, %s67
      %p69 = scmp.eq.s32.totalorder %s68, 0
      %s71 = sadd.s32 %s70, 1
      %s72 = scalar_select %p69, %s70, %s71
      %p75 = pneg %p69
      %p76 = scmp.eq.s32.totalorder %s20, 3
      %p77 = por %p75, %p76
      %p78 = scmp.ne.s32.totalorder %s70, %s73
      %p79 = scmp.eq.s32.totalorder %s20, 0
      %p80 = por %p78, %p79
      %p81 = scmp.ne.s32.totalorder %s70, %s73
      %p82 = scmp.eq.s32.totalorder %s25, 3
      %p83 = por %p81, %p82
      %p84 = scmp.ne.s32.totalorder %s73, %s74
      %p85 = scmp.eq.s32.totalorder %s25, 0
      %p86 = por %p84, %p85
      %p87 = scmp.ne.s32.totalorder %s73, %s74
      %p88 = scmp.eq.s32.totalorder %s26, 3
      %p89 = por %p87, %p88
      %p91 = scmp.ne.s32.totalorder %s74, %s90
      %p92 = scmp.eq.s32.totalorder %s26, 0
      %p93 = por %p91, %p92
      %s94 = ssub.s32 %s27, %s39
      %s95 = ssub.s32 %s28, %s35
      %s96 = sor.u32 %s94, %s95
      %p97 = scmp.eq.s32.totalorder %s96, 0
      %s99 = sadd.s32 %s98, 1
      %s100 = scalar_select %p97, %s98, %s99
      %p103 = pneg %p97
      %p104 = scmp.eq.s32.totalorder %s20, 3
      %p105 = por %p103, %p104
      %p106 = scmp.ne.s32.totalorder %s98, %s101
      %p107 = scmp.eq.s32.totalorder %s20, 0
      %p108 = por %p106, %p107
      %p109 = scmp.ne.s32.totalorder %s98, %s101
      %p110 = scmp.eq.s32.totalorder %s25, 3
      %p111 = por %p109, %p110
      %p112 = scmp.ne.s32.totalorder %s101, %s102
      %p113 = scmp.eq.s32.totalorder %s25, 0
      %p114 = por %p112, %p113
      %p115 = scmp.ne.s32.totalorder %s101, %s102
      %p116 = scmp.eq.s32.totalorder %s26, 3
      %p117 = por %p115, %p116
      %p119 = scmp.ne.s32.totalorder %s102, %s118
      %p120 = scmp.eq.s32.totalorder %s26, 0
      %p121 = por %p119, %p120
      %s122 = ssub.s32 %s27, %s39
      %p123 = scmp.eq.s32.totalorder %s122, 0
      %s125 = sadd.s32 %s124, 1
      %s126 = scalar_select %p123, %s124, %s125
      %p129 = pneg %p123
      %p130 = scmp.eq.s32.totalorder %s20, 3
      %p131 = por %p129, %p130
      %p132 = scmp.ne.s32.totalorder %s124, %s127
      %p133 = scmp.eq.s32.totalorder %s20, 0
      %p134 = por %p132, %p133
      %p135 = scmp.ne.s32.totalorder %s124, %s127
      %p136 = scmp.eq.s32.totalorder %s25, 3
      %p137 = por %p135, %p136
      %p138 = scmp.ne.s32.totalorder %s127, %s128
      %p139 = scmp.eq.s32.totalorder %s25, 0
      %p140 = por %p138, %p139
      %p141 = scmp.ne.s32.totalorder %s127, %s128
      %p142 = scmp.eq.s32.totalorder %s26, 3
      %p143 = por %p141, %p142
      %p145 = scmp.ne.s32.totalorder %s128, %s144
      %p146 = scmp.eq.s32.totalorder %s26, 0
      %p147 = por %p145, %p146
      %s148 = ssub.s32 %s27, %s39
      %p149 = scmp.eq.s32.totalorder %s148, 0
      %s151 = sadd.s32 %s150, 1
      %s152 = scalar_select %p149, %s150, %s151
      %p155 = pneg %p149
      %p156 = scmp.eq.s32.totalorder %s20, 3
      %p157 = por %p155, %p156
      %p158 = scmp.ne.s32.totalorder %s150, %s153
      %p159 = scmp.eq.s32.totalorder %s20, 0
      %p160 = por %p158, %p159
      %p161 = scmp.ne.s32.totalorder %s150, %s153
      %p162 = scmp.eq.s32.totalorder %s25, 3
      %p163 = por %p161, %p162
      %p164 = scmp.ne.s32.totalorder %s153, %s154
      %p165 = scmp.eq.s32.totalorder %s25, 0
      %p166 = por %p164, %p165
      %p167 = scmp.ne.s32.totalorder %s153, %s154
      %p168 = scmp.eq.s32.totalorder %s26, 3
      %p169 = por %p167, %p168
      %p171 = scmp.ne.s32.totalorder %s154, %s170
      %p172 = scmp.eq.s32.totalorder %s26, 0
      %p173 = por %p171, %p172
      %p174 = scmp.le.s32.totalorder 1, %s20
      %p175 = scmp.lt.s32.totalorder %s20, 5
      %p176 = pnand %p174, %p175
      %p177 = pneg %p176
      // Predicated region
      $region9: #{tpu_custom_call.1} parent=5 // pred_check
        _
      $region10: #{tpu_custom_call.1} parent=5 // pred_check_branch
        %179 = sbr.rel (%p176) target = $region12
      $region11: #{tpu_custom_call.1} parent=5 // pred_region
        %s180 = ssub.s32 %s20, 1
      $region12: #{tpu_custom_call.1} parent=5 // pred_fallthru
        _
      %p181 = scmp.lt.s32.totalorder %s20, 4
      // Predicated region
      $region13: #{tpu_custom_call.1} parent=5 // pred_check
        %p182 = pneg %p181
      $region14: #{tpu_custom_call.1} parent=5 // pred_check_branch
        %184 = sbr.rel (%p182) target = $region16
      $region15: #{tpu_custom_call.1} parent=5 // pred_region
        // Predicated region
        $region17: #{tpu_custom_call.1} parent=15 // pred_check
          %p185 = pneg %p52
        $region18: #{tpu_custom_call.1} parent=15 // pred_check_branch
          %187 = sbr.rel (%p185) target = $region20
        $region19: #{tpu_custom_call.1} parent=15 // pred_region
          %s188 = sand.u32 %s42, 1
          %s189 = scalar_lea.sflag [#allocation3], %s188
          %s190 = sand.u32 %s42, 1
          %s191 = smul.addr %s190, 4
          %s192 = scalar_lea.vmem [#allocation2], %s191
          %s194 = ssub.s32 64, 64
          %195 = vsyncadd %s189, %s194
          %s196 = smul.addr %s27, 64
          %s197 = scalar_lea.hbm %s0, %s196
          %s199 = sshll.u32 %s192, 4
          %s200 = int_to_ptr.vmem [resolvable:$true] %s199
          %202 = dma.hbm_to_vmem [thread:$0]  %s197, 64, %s200, %s189
        $region20: #{tpu_custom_call.1} parent=15 // pred_fallthru
          _
        // Predicated region
        $region21: #{tpu_custom_call.1} parent=15 // pred_check
          %p203 = pneg %p80
        $region22: #{tpu_custom_call.1} parent=15 // pred_check_branch
          %205 = sbr.rel (%p203) target = $region24
        $region23: #{tpu_custom_call.1} parent=15 // pred_region
          %s206 = sand.u32 %s70, 1
          %s207 = scalar_lea.sflag [#allocation6], %s206
          %s208 = sand.u32 %s70, 1
          %s209 = smul.addr %s208, 32
          %s210 = scalar_lea.vmem [#allocation5], %s209
          %s211 = smul.u32 4, %s28
          %s213 = ssub.s32 512, 512
          %214 = vsyncadd %s207, %s213
          %s215 = smul.addr %s27, 8
          %s216 = sadd.s32 %s211, %s215
          %s217 = smul.addr %s216, 64
          %s218 = scalar_lea.hbm %s1, %s217
          %s219 = sshll.u32 %s210, 4
          %s220 = int_to_ptr.vmem [resolvable:$true] %s219
          %225 = dma.hbm_to_vmem [thread:$0]  %s218, 512, %s220, %s207, 256, 256, 16
        $region24: #{tpu_custom_call.1} parent=15 // pred_fallthru
          _
      $region16: #{tpu_custom_call.1} parent=5 // pred_fallthru
        _
      %p226 = scmp.le.s32.totalorder 1, %s20
      %p227 = scmp.lt.s32.totalorder %s20, 5
      %p228 = pnand %p226, %p227
      %p229 = pneg %p228
      // Predicated region
      $region25: #{tpu_custom_call.1} parent=5 // pred_check
        _
      $region26: #{tpu_custom_call.1} parent=5 // pred_check_branch
        %231 = sbr.rel (%p228) target = $region28
      $region27: #{tpu_custom_call.1} parent=5 // pred_region
        %s232 = ssub.s32 %s20, 1
        %s233 = sand.u32 %s45, 1
        %s234 = scalar_lea.sflag [#allocation3], %s233
        %s235 = sand.u32 %s45, 1
        %s236 = smul.addr %s235, 4
        %s237 = scalar_lea.vmem [#allocation2], %s236
        // Predicated region
        $region29: #{tpu_custom_call.1} parent=27 // pred_check
          %p238 = pneg %p58
        $region30: #{tpu_custom_call.1} parent=27 // pred_check_branch
          %240 = sbr.rel (%p238) target = $region32
        $region31: #{tpu_custom_call.1} parent=27 // pred_region
          %241 = dma.done %s234, 64
        $region32: #{tpu_custom_call.1} parent=27 // pred_fallthru
          _
        %s242 = sand.u32 %s73, 1
        %s243 = scalar_lea.sflag [#allocation6], %s242
        %s244 = sand.u32 %s73, 1
        %s245 = smul.addr %s244, 32
        %s246 = scalar_lea.vmem [#allocation5], %s245
        // Predicated region
        $region33: #{tpu_custom_call.1} parent=27 // pred_check
          %p247 = pneg %p86
        $region34: #{tpu_custom_call.1} parent=27 // pred_check_branch
          %249 = sbr.rel (%p247) target = $region36
        $region35: #{tpu_custom_call.1} parent=27 // pred_region
          %250 = dma.done %s243, 512
        $region36: #{tpu_custom_call.1} parent=27 // pred_fallthru
          _
        %s251 = sand.u32 %s45, 1
        %s252 = scalar_lea.sflag [#allocation3], %s251
        %s253 = sand.u32 %s45, 1
        %s254 = smul.addr %s253, 4
        %s255 = scalar_lea.vmem [#allocation2], %s254
        %p256 = pneg %p58
        %p257 = pneg %p55
        %s258 = sand.u32 %s73, 1
        %s259 = scalar_lea.sflag [#allocation6], %s258
        %s260 = sand.u32 %s73, 1
        %s261 = smul.addr %s260, 32
        %s262 = scalar_lea.vmem [#allocation5], %s261
        %p263 = pneg %p86
        %p264 = pneg %p83
        %p265 = pneg %p114
        %p266 = pneg %p111
        %s267 = sand.u32 %s101, 1
        %s268 = scalar_lea.sflag [#allocation4], %s267
        %s269 = sand.u32 %s101, 1
        %s270 = smul.addr %s269, 16
        %s271 = scalar_lea.vmem [#allocation7], %s270
        %p272 = pneg %p140
        %p273 = pneg %p137
        %p274 = scmp.lt.s32.totalorder %s29, 3
        %s275 = scalar_select %p274, %s29, 3
        %s276 = smul.addr %s275, 8
        %s277 = scalar_lea.vmem %s3, %s276
        %p278 = pneg %p166
        %p279 = pneg %p163
        %p280 = scmp.lt.s32.totalorder %s29, 3
        %s281 = scalar_select %p280, %s29, 3
        %s282 = smul.addr %s281, 8
        %s283 = scalar_lea.vmem %s4, %s282
        %s284 = smul.u32 4, %s30
        %s285 = smul.u32 4, %s30
        %p286 = scmp.lt.s32.totalorder %s29, 3
        %s287 = scalar_select %p286, %s29, 3
        %s288 = smul.addr %s287, 8
        %s289 = scalar_lea.vmem %s3, %s288
        %p290 = scmp.lt.s32.totalorder %s29, 3
        %s291 = scalar_select %p290, %s29, 3
        %s292 = smul.addr %s291, 8
        %s293 = scalar_lea.vmem %s4, %s292
        %p295 = scmp.eq.s32.totalorder %s30, 0
        // Predicated region
        $region37: #{tpu_custom_call.1} parent=27 // pred_check
          %p296 = pneg %p295
        $region38: #{tpu_custom_call.1} parent=27 // pred_check_branch
          %298 = sbr.rel (%p296) target = $region40
        $region39: #{tpu_custom_call.1} parent=27 // pred_region
          %vm299 = vcmask 7168
          %300 = vst.msk [vmem:[%s289] sm:$0xff] %vm299, 0.0
          %301 = vst.msk [vmem:[%s293] sm:$0xff] %vm299, 0.0
        $region40: #{tpu_custom_call.1} parent=27 // pred_fallthru
          _
        %v302 = vld [vmem:[%s237] sm:$0xf]
        %v303 = vld [vmem:[%s246] sm:$0xff]
        %v304 = vld [vmem:[%s246 + $0x8] sm:$0xff]
        %v305 = vld [vmem:[%s246 + $0x10] sm:$0xff]
        %v306 = vld [vmem:[%s246 + $0x18] sm:$0xff]
        %v311 = vunpack.c.l.b16 %v303
        %v312 = vunpack.c.h.b16 %v303
        %v313 = vunpack.c.l.b16 %v304
        %v314 = vunpack.c.h.b16 %v304
        %v315 = vunpack.c.l.b16 %v305
        %v316 = vunpack.c.h.b16 %v305
        %v317 = vunpack.c.l.b16 %v306
        %v318 = vunpack.c.h.b16 %v306
        %v319 = vpack.c.b16 %v315, %v311
        %v320 = vpack.c.b16 %v316, %v312
        %v321 = vpack.c.b16 %v317, %v313
        %v322 = vpack.c.b16 %v318, %v314
        %vm327 = vcmask 130048
        %v329 = vsel %vm327, %v302, 0
        %331 = vmatprep.subr.bf16.mxu0 %v320
        %332 = vmatpush1.bf16.msra.mxu0 %v319
        %333 = vmatprep.subr.bf16.mxu0 0
        %334 = vmatpush1.bf16.msra.mxu0 0
        %335 = vmatprep.subr.bf16.mxu0 0
        %336 = vmatpush1.bf16.msra.mxu0 0
        %337 = vmatprep.subr.bf16.mxu0 0
        %338 = vmatpush1.bf16.msra.mxu0 0
        %339 = vmatprep.subr.bf16.mxu0 0
        %340 = vmatpush1.bf16.msra.mxu0 0
        %341 = vmatprep.subr.bf16.mxu0 0
        %342 = vmatpush1.bf16.msra.mxu0 0
        %343 = vmatprep.subr.bf16.mxu0 0
        %344 = vmatpush1.bf16.msra.mxu0 0
        %345 = vmatprep.subr.bf16.mxu0 0
        %346 = vmatpush1.bf16.msra.mxu0 0
        %347 = vmatprep.subr.bf16.mxu0 0
        %348 = vmatpush1.bf16.msra.mxu0 0
        %349 = vmatprep.subr.bf16.mxu0 0
        %350 = vmatpush1.bf16.msra.mxu0 0
        %351 = vmatprep.subr.bf16.mxu0 0
        %352 = vmatpush1.bf16.msra.mxu0 0
        %353 = vmatprep.subr.bf16.mxu0 0
        %354 = vmatpush1.bf16.msra.mxu0 0
        %355 = vmatprep.subr.bf16.mxu0 0
        %356 = vmatpush1.bf16.msra.mxu0 0
        %357 = vmatprep.subr.bf16.mxu0 0
        %358 = vmatpush1.bf16.msra.mxu0 0
        %359 = vmatprep.subr.bf16.mxu0 0
        %360 = vmatpush1.bf16.msra.mxu0 0
        %361 = vmatprep.subr.bf16.mxu0 0
        %362 = vmatpush1.bf16.msra.mxu0 0
        %363 = vmatprep.mubr.bf16.mxu0 0
        %364 = vmatmul.mubr.bf16.gmra.mrb[0].mxu0 %v329
        %v365 = vpop.f32.mrb[0].mxu0
        %v366 = vadd.f32 0.0, %v365
        %v367 = vpop.f32.mrb[0].mxu0
        %v368 = vadd.f32 0.0, %v367
        %v369 = vpop.f32.mrb[0].mxu0
        %v370 = vpop.f32.mrb[0].mxu0
        %371 = vdwg.mxu0
        %372 = vmatprep.subr.bf16.mxu0 %v322
        %373 = vmatpush1.bf16.msra.mxu0 %v321
        %374 = vmatprep.subr.bf16.mxu0 0
        %375 = vmatpush1.bf16.msra.mxu0 0
        %376 = vmatprep.subr.bf16.mxu0 0
        %377 = vmatpush1.bf16.msra.mxu0 0
        %378 = vmatprep.subr.bf16.mxu0 0
        %379 = vmatpush1.bf16.msra.mxu0 0
        %380 = vmatprep.subr.bf16.mxu0 0
        %381 = vmatpush1.bf16.msra.mxu0 0
        %382 = vmatprep.subr.bf16.mxu0 0
        %383 = vmatpush1.bf16.msra.mxu0 0
        %384 = vmatprep.subr.bf16.mxu0 0
        %385 = vmatpush1.bf16.msra.mxu0 0
        %386 = vmatprep.subr.bf16.mxu0 0
        %387 = vmatpush1.bf16.msra.mxu0 0
        %388 = vmatprep.subr.bf16.mxu0 0
        %389 = vmatpush1.bf16.msra.mxu0 0
        %390 = vmatprep.subr.bf16.mxu0 0
        %391 = vmatpush1.bf16.msra.mxu0 0
        %392 = vmatprep.subr.bf16.mxu0 0
        %393 = vmatpush1.bf16.msra.mxu0 0
        %394 = vmatprep.subr.bf16.mxu0 0
        %395 = vmatpush1.bf16.msra.mxu0 0
        %396 = vmatprep.subr.bf16.mxu0 0
        %397 = vmatpush1.bf16.msra.mxu0 0
        %398 = vmatprep.subr.bf16.mxu0 0
        %399 = vmatpush1.bf16.msra.mxu0 0
        %400 = vmatprep.subr.bf16.mxu0 0
        %401 = vmatpush1.bf16.msra.mxu0 0
        %402 = vmatprep.subr.bf16.mxu0 0
        %403 = vmatpush1.bf16.msra.mxu0 0
        %404 = vmatprep.mubr.bf16.mxu0 0
        %405 = vmatmul.mubr.bf16.gmra.mrb[0].mxu0 %v329
        %v406 = vpop.f32.mrb[0].mxu0
        %v407 = vadd.f32 0.0, %v406
        %v408 = vpop.f32.mrb[0].mxu0
        %v409 = vadd.f32 0.0, %v408
        %v410 = vpop.f32.mrb[0].mxu0
        %v411 = vpop.f32.mrb[0].mxu0
        %412 = vdwg.mxu0
        %v413 = vld [vmem:[%s289] sm:$0xff]
        %v414 = vadd.f32 %v366, %v368
        %v415 = vadd.f32 %v414, %v407
        %v416 = vadd.f32 %v415, %v409
        %417 = vadd.xlane.f32.xlu0 %v416
        %v418 = vpop.xlane.xlu0 %417
        %v419 = vadd.f32 %v413, %v418
        %vm420 = vcmask 7168
        %421 = vst.msk [vmem:[%s289] sm:$0xff] %vm420, %v419
        %v422 = vld [vmem:[%s293] sm:$0xff]
        %v423 = vmul.f32 %v366, %v366
        %v424 = vmul.f32 %v368, %v368
        %v425 = vmul.f32 %v407, %v407
        %v426 = vmul.f32 %v409, %v409
        %v427 = vadd.f32 %v423, %v424
        %v428 = vadd.f32 %v427, %v425
        %v429 = vadd.f32 %v428, %v426
        %430 = vadd.xlane.f32.xlu0 %v429
        %v431 = vpop.xlane.xlu0 %430
        %v432 = vadd.f32 %v422, %v431
        %433 = vst.msk [vmem:[%s293] sm:$0xff] %vm420, %v432
        %v434 = vpack.c.bf16 %v366, %v366
        %v435 = vpack.c.bf16 %v368, %v368
        %v436 = vpack.c.bf16 %v407, %v407
        %v437 = vpack.c.bf16 %v409, %v409
        %v442 = vunpack.c.l.b16 %v434
        %v443 = vunpack.c.l.b16 %v435
        %v444 = vunpack.c.l.b16 %v436
        %v445 = vunpack.c.l.b16 %v437
        %v446 = vpack.c.b16 %v443, %v442
        %v447 = vpack.c.b16 %v445, %v444
        %450 = vst [vmem:[%s271] sm:$0xff] %v446
        %451 = vst [vmem:[%s271 + $0x8] sm:$0xff] %v447
        %s452 = sand.u32 %s101, 1
        %s453 = scalar_lea.sflag [#allocation4], %s452
        %s454 = sand.u32 %s101, 1
        %s455 = smul.addr %s454, 16
        %s456 = scalar_lea.vmem [#allocation7], %s455
        %p457 = scmp.lt.s32.totalorder %s29, 3
        %s458 = scalar_select %p457, %s29, 3
        %s459 = smul.addr %s458, 8
        %s460 = scalar_lea.vmem %s3, %s459
        %p461 = scmp.lt.s32.totalorder %s29, 3
        %s462 = scalar_select %p461, %s29, 3
        %s463 = smul.addr %s462, 8
        %s464 = scalar_lea.vmem %s4, %s463
        // Predicated region
        $region41: #{tpu_custom_call.1} parent=27 // pred_check
          %p465 = pneg %p111
        $region42: #{tpu_custom_call.1} parent=27 // pred_check_branch
          %467 = sbr.rel (%p465) target = $region44
        $region43: #{tpu_custom_call.1} parent=27 // pred_region
          %s468 = smul.u32 4, %s30
          %s470 = ssub.s32 256, 256
          %471 = vsyncadd %s453, %s470
          %s472 = smul.addr %s29, 4
          %s473 = sadd.s32 %s468, %s472
          %s474 = smul.addr %s473, 64
          %s475 = scalar_lea.hbm %s2, %s474
          %s477 = sshll.u32 %s456, 4
          %s478 = int_to_ptr.vmem [resolvable:$true] %s477
          %480 = dma.vmem_to_hbm [thread:$0]  %s478, 256, %s475, %s453
        $region44: #{tpu_custom_call.1} parent=27 // pred_fallthru
          _
        // Predicated region
        $region45: #{tpu_custom_call.1} parent=27 // pred_check
          %p481 = pneg %p137
        $region46: #{tpu_custom_call.1} parent=27 // pred_check_branch
          %483 = sbr.rel (%p481) target = $region48
        $region47: #{tpu_custom_call.1} parent=27 // pred_region
          _
        $region48: #{tpu_custom_call.1} parent=27 // pred_fallthru
          _
        // Predicated region
        $region49: #{tpu_custom_call.1} parent=27 // pred_check
          %p484 = pneg %p163
        $region50: #{tpu_custom_call.1} parent=27 // pred_check_branch
          %486 = sbr.rel (%p484) target = $region52
        $region51: #{tpu_custom_call.1} parent=27 // pred_region
          _
        $region52: #{tpu_custom_call.1} parent=27 // pred_fallthru
          _
      $region28: #{tpu_custom_call.1} parent=5 // pred_fallthru
        _
      %p487 = scmp.le.s32.totalorder 2, %s20
      // Predicated region
      $region53: #{tpu_custom_call.1} parent=5 // pred_check
        %p488 = pneg %p487
      $region54: #{tpu_custom_call.1} parent=5 // pred_check_branch
        %490 = sbr.rel (%p488) target = $region56
      $region55: #{tpu_custom_call.1} parent=5 // pred_region
        %s491 = ssub.s32 %s20, 2
        // Predicated region
        $region57: #{tpu_custom_call.1} parent=55 // pred_check
          %p492 = pneg %p117
        $region58: #{tpu_custom_call.1} parent=55 // pred_check_branch
          %494 = sbr.rel (%p492) target = $region60
        $region59: #{tpu_custom_call.1} parent=55 // pred_region
          %s495 = sand.u32 %s102, 1
          %s496 = scalar_lea.sflag [#allocation4], %s495
          %s497 = sand.u32 %s102, 1
          %s498 = smul.addr %s497, 16
          %s499 = scalar_lea.vmem [#allocation7], %s498
          %500 = dma.done %s496, 256
        $region60: #{tpu_custom_call.1} parent=55 // pred_fallthru
          _
        // Predicated region
        $region61: #{tpu_custom_call.1} parent=55 // pred_check
          %p501 = pneg %p143
        $region62: #{tpu_custom_call.1} parent=55 // pred_check_branch
          %503 = sbr.rel (%p501) target = $region64
        $region63: #{tpu_custom_call.1} parent=55 // pred_region
          %p504 = scmp.lt.s32.totalorder %s31, 3
          %s505 = scalar_select %p504, %s31, 3
          %s506 = smul.addr %s505, 8
          %s507 = scalar_lea.vmem %s3, %s506
        $region64: #{tpu_custom_call.1} parent=55 // pred_fallthru
          _
        // Predicated region
        $region65: #{tpu_custom_call.1} parent=55 // pred_check
          %p508 = pneg %p169
        $region66: #{tpu_custom_call.1} parent=55 // pred_check_branch
          %510 = sbr.rel (%p508) target = $region68
        $region67: #{tpu_custom_call.1} parent=55 // pred_region
          %p511 = scmp.lt.s32.totalorder %s31, 3
          %s512 = scalar_select %p511, %s31, 3
          %s513 = smul.addr %s512, 8
          %s514 = scalar_lea.vmem %s4, %s513
        $region68: #{tpu_custom_call.1} parent=55 // pred_fallthru
          _
      $region56: #{tpu_custom_call.1} parent=5 // pred_fallthru
        _
    $region6: #{tpu_custom_call.1} parent=1 // loop_footer
      %s24 = sadd.s32 1, %s20
    $region7: #{tpu_custom_call.1} parent=1 // loop_footer_branch
      %19 = sbr.rel target = $region3
    $region8: #{tpu_custom_call.1} parent=1 // loop_exit
      _
    %515 = vsyncpa [#allocation3], 1
    %s516 = scalar_lea.sflag [#allocation3], 1
    %517 = vsyncpa %s516, 1
    %518 = vsyncpa [#allocation6], 1
    %s519 = scalar_lea.sflag [#allocation6], 1
    %520 = vsyncpa %s519, 1
    %521 = vsyncpa [#allocation4], 1
    %s522 = scalar_lea.sflag [#allocation4], 1
    %523 = vsyncpa %s522, 1

</llo_original>
